<compile_context>
chip_gen: v5e
topology: v5e:2x2
jax: 0.10.0
libtpu: 0.0.40
codegen_flags: <defaults>
</compile_context>

<pallas_src>
import functools

import jax
import jax.numpy as jnp
from jax import lax
from jax.experimental import pallas as pl
from jax.experimental.pallas import tpu as pltpu

STATE_DIM = 4     # CartPole observation dim
ACTION_DIM = 2    # CartPole action dim
HIDDEN = 64

_LANE = 128
_MAX_BT = 8192                     # ~7 MB of f32 intermediates -> fits v5e's 16 MiB scoped VMEM
_VMEM_LIMIT = 32 * 1024 * 1024     # safe on all generations (<= v7x physical 64 MiB)


def _round_up(n, m):
    return ((n + m - 1) // m) * m


def _cdiv(a, b):
    return -(-a // b)


def qnetwork_kernel(x_ref, w1_ref, b1_ref, w2_ref, b2_ref, w3_ref, b3_ref,
                    q_ref, act_ref, *, mxu_dtype):
    # x_ref: [bt, STATE_DIM] row-major batch tile (batch on sublanes only for the DMA).
    x = x_ref[...]

    # ---- Layer 1: contract the 4-wide feature axis directly on the row-major
    # tile (MXU trans-B pattern); result [HIDDEN, bt] puts batch on lanes for
    # the rest of the kernel.  Kept in f32 (K=4 is tiny; accuracy is free).
    h1 = lax.dot_general(w1_ref[...], x,
                         dimension_numbers=(((1,), (1,)), ((), ())),
                         preferred_element_type=jnp.float32)
    h1 = jnp.maximum(h1 + b1_ref[...], 0.0)             # [HIDDEN, bt], f32 VPU

    # ---- Layers 2-3 on the MXU at native bf16 rate, f32 accumulation.
    h2 = jnp.dot(w2_ref[...].astype(mxu_dtype), h1.astype(mxu_dtype),
                 preferred_element_type=jnp.float32) + b2_ref[...]
    h2 = jnp.maximum(h2, 0.0)                            # [HIDDEN, bt], f32

    q = jnp.dot(w3_ref[...].astype(mxu_dtype), h2.astype(mxu_dtype),
                preferred_element_type=jnp.float32) + b3_ref[...]

    q_ref[...] = q.astype(q_ref.dtype)                   # [ACTION_DIM, bt] lane-dense
    # Fused greedy action: argmax over the 2 actions (ties -> action 0).
    act_ref[...] = (q[1:2, :] > q[0:1, :]).astype(jnp.int32)   # [1, bt] lane-dense


def _pick_tile(b_pad, block_b):
    """Largest lane-multiple tile that divides b_pad, capped at block_b and
    chosen so the grid has >= 2 steps when possible (v7x megacore)."""
    n = b_pad // _LANE
    d_cap = max(1, min(block_b, _MAX_BT) // _LANE)
    d_target = max(1, min(d_cap, _cdiv(n, 2)))
    d = 1
    for cand in range(min(d_target, n), 0, -1):
        if n % cand == 0:
            d = cand
            break
    # NOTE: a pathological prime n falls back to 128-wide tiles; acceptable.
    return _LANE * d


def qnetwork_forward(x, params, *, block_b=_MAX_BT, mxu_dtype=jnp.bfloat16,
                     return_actions=False):
    """x: [B, STATE_DIM] f32 -> Q-values [B, ACTION_DIM] f32
    (plus greedy actions [B] int32 if return_actions=True)."""
    w1, b1, w2, b2, w3, b3 = params
    B = x.shape[0]

    # Pad batch only to the lane width (128), never to the tile size.
    B_pad = _round_up(max(B, 1), _LANE)
    if B_pad != B:
        x = jnp.pad(x, ((0, B_pad - B), (0, 0)))

    bt = _pick_tile(B_pad, block_b)
    grid = (B_pad // bt,)

    resident = lambda shape: pl.BlockSpec(shape, lambda i: (0, 0))

    q_t, act_t = pl.pallas_call(
        functools.partial(qnetwork_kernel, mxu_dtype=mxu_dtype),
        out_shape=(jax.ShapeDtypeStruct((ACTION_DIM, B_pad), jnp.float32),
                   jax.ShapeDtypeStruct((1, B_pad), jnp.int32)),
        grid=grid,
        in_specs=[
            pl.BlockSpec((bt, STATE_DIM), lambda i: (i, 0)),   # x tile (pipelined)
            resident(w1.shape), resident(b1.shape),            # weights stay in VMEM
            resident(w2.shape), resident(b2.shape),
            resident(w3.shape), resident(b3.shape),
        ],
        out_specs=(pl.BlockSpec((ACTION_DIM, bt), lambda i: (0, i)),
                   pl.BlockSpec((1, bt), lambda i: (0, i))),
        compiler_params=pltpu.CompilerParams(
            dimension_semantics=("parallel",),
            vmem_limit_bytes=_VMEM_LIMIT),
    )(x, w1, b1, w2, b2, w3, b3)

    q = q_t[:, :B].T                                      # [B, ACTION_DIM]
    if return_actions:
        return q, act_t[0, :B]
    return q


def init_params(key):
    """Mimics torch.nn.Linear default init (uniform +/- 1/sqrt(fan_in)).
    Weights stored in torch layout [out, in]; biases as [out, 1] columns."""
    def linear(key, fan_in, fan_out):
        kw, kb = jax.random.split(key)
        bound = 1.0 / jnp.sqrt(fan_in)
        w = jax.random.uniform(kw, (fan_out, fan_in), jnp.float32, -bound, bound)
        b = jax.random.uniform(kb, (fan_out, 1), jnp.float32, -bound, bound)
        return w, b

    k1, k2, k3 = jax.random.split(key, 3)
    w1, b1 = linear(k1, STATE_DIM, HIDDEN)
    w2, b2 = linear(k2, HIDDEN, HIDDEN)
    w3, b3 = linear(k3, HIDDEN, ACTION_DIM)
    return (w1, b1, w2, b2, w3, b3)


def reference_forward(x, params):
    """Pure-JAX f32 reference in standard row layout (matches torch semantics)."""
    w1, b1, w2, b2, w3, b3 = params
    h1 = jnp.maximum(x @ w1.T + b1.T, 0.0)
    h2 = jnp.maximum(h1 @ w2.T + b2.T, 0.0)
    return h2 @ w3.T + b3.T


if __name__ == "__main__":
    key = jax.random.PRNGKey(0)
    kp, kx1, kx2 = jax.random.split(key, 3)

    params = init_params(kp)

    # Small single-tile batch.
    x_small = jax.random.normal(kx1, (8, STATE_DIM), dtype=jnp.float32)
    ref_small = reference_forward(x_small, params)

    # Exact f32 MXU path.
    q_f32 = jax.block_until_ready(
        qnetwork_forward(x_small, params, mxu_dtype=jnp.float32))
    assert q_f32.shape == (8, ACTION_DIM)
    assert jnp.allclose(q_f32, ref_small, atol=1e-5, rtol=1e-5)

    # Default bf16-MXU path (tolerance loosened per perf review) + fused argmax.
    q_bf16, act = qnetwork_forward(x_small, params, return_actions=True)
    q_bf16, act = jax.block_until_ready((q_bf16, act))
    assert jnp.allclose(q_bf16, ref_small, atol=1e-1, rtol=5e-2)
    assert jnp.array_equal(act, jnp.argmax(q_bf16, axis=1).astype(jnp.int32))

    # Non-multiple-of-128 batch exercising input padding + a 2-step grid.
    x_multi = jax.random.normal(kx2, (200, STATE_DIM), dtype=jnp.float32)
    q_multi = jax.block_until_ready(qnetwork_forward(x_multi, params))
    assert q_multi.shape == (200, ACTION_DIM)
    assert jnp.allclose(q_multi, reference_forward(x_multi, params),
                        atol=1e-1, rtol=5e-2)

    print("KERNEL_OK")
</pallas_src>

<mosaic_0001>
module attributes {stable_mosaic.version = 11 : i64} {
  func.func @qnetwork_kernel(%arg0: i32, %arg1: memref<128x4xf32, #tpu.memory_space<vmem>>, %arg2: memref<64x4xf32, #tpu.memory_space<vmem>>, %arg3: memref<64x1xf32, #tpu.memory_space<vmem>>, %arg4: memref<64x64xf32, #tpu.memory_space<vmem>>, %arg5: memref<64x1xf32, #tpu.memory_space<vmem>>, %arg6: memref<2x64xf32, #tpu.memory_space<vmem>>, %arg7: memref<2x1xf32, #tpu.memory_space<vmem>>, %arg8: memref<2x128xf32, #tpu.memory_space<vmem>>, %arg9: memref<1x128xi32, #tpu.memory_space<vmem>>) attributes {dimension_semantics = [#tpu.dimension_semantics<parallel>], iteration_bounds = array<i64: 1>, scalar_prefetch = 0 : i64, scratch_operands = 0 : i64, tpu.core_type = #tpu.core_type<tc>, window_params = [{transform_indices = @transform_0, window_bounds = array<i64: 128, 4>}, {pipeline_mode = #tpu.pipeline_mode<synchronous>, transform_indices = @transform_1, window_bounds = array<i64: 64, 4>}, {pipeline_mode = #tpu.pipeline_mode<synchronous>, transform_indices = @transform_2, window_bounds = array<i64: 64, 1>}, {pipeline_mode = #tpu.pipeline_mode<synchronous>, transform_indices = @transform_3, window_bounds = array<i64: 64, 64>}, {pipeline_mode = #tpu.pipeline_mode<synchronous>, transform_indices = @transform_4, window_bounds = array<i64: 64, 1>}, {pipeline_mode = #tpu.pipeline_mode<synchronous>, transform_indices = @transform_5, window_bounds = array<i64: 2, 64>}, {pipeline_mode = #tpu.pipeline_mode<synchronous>, transform_indices = @transform_6, window_bounds = array<i64: 2, 1>}, {transform_indices = @transform_7, window_bounds = array<i64: 2, 128>}, {transform_indices = @transform_8, window_bounds = array<i64: 1, 128>}]} {
    %c0 = arith.constant 0 : index
    %c0_0 = arith.constant 0 : index
    %0 = vector.load %arg1[%c0, %c0_0] : memref<128x4xf32, #tpu.memory_space<vmem>>, vector<128x4xf32>
    %c0_1 = arith.constant 0 : index
    %c0_2 = arith.constant 0 : index
    %1 = vector.load %arg2[%c0_1, %c0_2] : memref<64x4xf32, #tpu.memory_space<vmem>>, vector<64x4xf32>
    %cst = arith.constant dense<0.000000e+00> : vector<64x128xf32>
    %2 = tpu.matmul %1, %0, %cst {dimension_numbers = #tpu.dot_dimension_numbers<[1], [1], [0], [0], [0, 0, 1, 0], [], []>} : vector<64x4xf32>, vector<128x4xf32>, vector<64x128xf32> -> vector<64x128xf32>
    %c0_3 = arith.constant 0 : index
    %c0_4 = arith.constant 0 : index
    %3 = vector.load %arg3[%c0_3, %c0_4] : memref<64x1xf32, #tpu.memory_space<vmem>>, vector<64x1xf32>
    %4 = vector.broadcast %3 : vector<64x1xf32> to vector<64x128xf32>
    %5 = arith.addf %2, %4 : vector<64x128xf32>
    %cst_5 = arith.constant 0.000000e+00 : f32
    %6 = vector.broadcast %cst_5 : f32 to vector<64x128xf32>
    %7 = arith.maximumf %5, %6 : vector<64x128xf32>
    %c0_6 = arith.constant 0 : index
    %c0_7 = arith.constant 0 : index
    %8 = vector.load %arg4[%c0_6, %c0_7] : memref<64x64xf32, #tpu.memory_space<vmem>>, vector<64x64xf32>
    %cst_8 = arith.constant dense<0.000000e+00> : vector<64x128xf32>
    %9 = tpu.matmul %8, %7, %cst_8 {dimension_numbers = #tpu.dot_dimension_numbers<[1], [0], [0], [1], [0, 0, 1, 1], [], []>} : vector<64x64xf32>, vector<64x128xf32>, vector<64x128xf32> -> vector<64x128xf32>
    %c0_9 = arith.constant 0 : index
    %c0_10 = arith.constant 0 : index
    %10 = vector.load %arg5[%c0_9, %c0_10] : memref<64x1xf32, #tpu.memory_space<vmem>>, vector<64x1xf32>
    %11 = vector.broadcast %10 : vector<64x1xf32> to vector<64x128xf32>
    %12 = arith.addf %9, %11 : vector<64x128xf32>
    %cst_11 = arith.constant 0.000000e+00 : f32
    %13 = vector.broadcast %cst_11 : f32 to vector<64x128xf32>
    %14 = arith.maximumf %12, %13 : vector<64x128xf32>
    %c0_12 = arith.constant 0 : index
    %c0_13 = arith.constant 0 : index
    %15 = vector.load %arg6[%c0_12, %c0_13] : memref<2x64xf32, #tpu.memory_space<vmem>>, vector<2x64xf32>
    %cst_14 = arith.constant dense<0.000000e+00> : vector<2x128xf32>
    %16 = tpu.matmul %15, %14, %cst_14 {dimension_numbers = #tpu.dot_dimension_numbers<[1], [0], [0], [1], [0, 0, 1, 1], [], []>} : vector<2x64xf32>, vector<64x128xf32>, vector<2x128xf32> -> vector<2x128xf32>
    %c0_15 = arith.constant 0 : index
    %c0_16 = arith.constant 0 : index
    %17 = vector.load %arg7[%c0_15, %c0_16] : memref<2x1xf32, #tpu.memory_space<vmem>>, vector<2x1xf32>
    %18 = vector.broadcast %17 : vector<2x1xf32> to vector<2x128xf32>
    %19 = arith.addf %16, %18 : vector<2x128xf32>
    %c0_17 = arith.constant 0 : index
    %c0_18 = arith.constant 0 : index
    %20 = vector.load %arg8[%c0_17, %c0_18] : memref<2x128xf32, #tpu.memory_space<vmem>>, vector<2x128xf32>
    tpu.vector_store %arg8[%c0_17, %c0_18], %19 {strides = array<i32>} : memref<2x128xf32, #tpu.memory_space<vmem>>, vector<2x128xf32>,
    %21 = vector.extract_strided_slice %19 {offsets = [1, 0], sizes = [1, 128], strides = [1, 1]} : vector<2x128xf32> to vector<1x128xf32>
    %22 = vector.extract_strided_slice %19 {offsets = [0, 0], sizes = [1, 128], strides = [1, 1]} : vector<2x128xf32> to vector<1x128xf32>
    %23 = arith.cmpf ogt, %21, %22 : vector<1x128xf32>
    %24 = arith.extui %23 : vector<1x128xi1> to vector<1x128xi32>
    %c0_19 = arith.constant 0 : index
    %c0_20 = arith.constant 0 : index
    %25 = vector.load %arg9[%c0_19, %c0_20] : memref<1x128xi32, #tpu.memory_space<vmem>>, vector<1x128xi32>
    tpu.vector_store %arg9[%c0_19, %c0_20], %24 {strides = array<i32>} : memref<1x128xi32, #tpu.memory_space<vmem>>, vector<1x128xi32>,
    return
  }
  func.func @transform_0(%arg0: i32) -> (i32, i32) {
    %c0_i32 = arith.constant 0 : i32
    %c0_i32_0 = arith.constant 0 : i32
    return %arg0, %c0_i32 : i32, i32
  }
  func.func @transform_1(%arg0: i32) -> (i32, i32) {
    %c0_i32 = arith.constant 0 : i32
    %c0_i32_0 = arith.constant 0 : i32
    %c0_i32_1 = arith.constant 0 : i32
    return %c0_i32, %c0_i32_0 : i32, i32
  }
  func.func @transform_2(%arg0: i32) -> (i32, i32) {
    %c0_i32 = arith.constant 0 : i32
    %c0_i32_0 = arith.constant 0 : i32
    %c0_i32_1 = arith.constant 0 : i32
    return %c0_i32, %c0_i32_0 : i32, i32
  }
  func.func @transform_3(%arg0: i32) -> (i32, i32) {
    %c0_i32 = arith.constant 0 : i32
    %c0_i32_0 = arith.constant 0 : i32
    %c0_i32_1 = arith.constant 0 : i32
    return %c0_i32, %c0_i32_0 : i32, i32
  }
  func.func @transform_4(%arg0: i32) -> (i32, i32) {
    %c0_i32 = arith.constant 0 : i32
    %c0_i32_0 = arith.constant 0 : i32
    %c0_i32_1 = arith.constant 0 : i32
    return %c0_i32, %c0_i32_0 : i32, i32
  }
  func.func @transform_5(%arg0: i32) -> (i32, i32) {
    %c0_i32 = arith.constant 0 : i32
    %c0_i32_0 = arith.constant 0 : i32
    %c0_i32_1 = arith.constant 0 : i32
    return %c0_i32, %c0_i32_0 : i32, i32
  }
  func.func @transform_6(%arg0: i32) -> (i32, i32) {
    %c0_i32 = arith.constant 0 : i32
    %c0_i32_0 = arith.constant 0 : i32
    %c0_i32_1 = arith.constant 0 : i32
    return %c0_i32, %c0_i32_0 : i32, i32
  }
  func.func @transform_7(%arg0: i32) -> (i32, i32) {
    %c0_i32 = arith.constant 0 : i32
    %c0_i32_0 = arith.constant 0 : i32
    return %c0_i32, %arg0 : i32, i32
  }
  func.func @transform_8(%arg0: i32) -> (i32, i32) {
    %c0_i32 = arith.constant 0 : i32
    %c0_i32_0 = arith.constant 0 : i32
    return %c0_i32, %arg0 : i32, i32
  }
}

</mosaic_0001>

<llo_original>
// kernel: tpu_custom_call.1
$region0: #{tpu_custom_call.1}
  #allocation0 [shape = 'u32[]', space=smem, size = 0x4, offset = 0x4, fixed_abs, tag = 'smem constant byte address 0x4 - core index']
  #allocation1 [shape = 'u32[72,128]{1,0:T(1,128)}', space=vmem, size = 0x9000, scoped, tag = 'internal scratch']
  %s0 = inlined_call_operand.vmem [shape: f32[128,4], index: 0, kind: input, shape index: {}]
  %s1 = inlined_call_operand.vmem [shape: f32[64,4], index: 1, kind: input, shape index: {}]
  %s2 = inlined_call_operand.vmem [shape: f32[64,1], index: 2, kind: input, shape index: {}]
  %s3 = inlined_call_operand.vmem [shape: f32[64,64], index: 3, kind: input, shape index: {}]
  %s4 = inlined_call_operand.vmem [shape: f32[64,1], index: 4, kind: input, shape index: {}]
  %s5 = inlined_call_operand.vmem [shape: f32[2,64], index: 5, kind: input, shape index: {}]
  %s6 = inlined_call_operand.vmem [shape: f32[2,1], index: 6, kind: input, shape index: {}]
  %s7 = inlined_call_operand.hbm [shape: f32[2,128], index: 7, kind: output, shape index: {0}]
  %s8 = inlined_call_operand.hbm [shape: s32[1,128], index: 8, kind: output, shape index: {1}]
  %9 = xla_tuple %s7, %s8
  %s10 = sld [smem:[#allocation0]]
  $region46: #{tpu_custom_call.1} parent=0
    _
  %s12 = ssub.s32 1, %s10
  %s13 = scalar_select 0, %s12, %s10
  $region1: #{tpu_custom_call.1} parent=0
    #allocation2 [shape = 'u8[1024]{0}', space=vmem, size = 0x400, scoped, tag = 'output window, operand 0, single buffered']
    #allocation3 [shape = 's32[1]{0}', space=sflag, size = 0x4, scoped, tag = 'scoped memory for tpu_custom_call.1']
    #allocation4 [shape = 'u8[512]{0}', space=vmem, size = 0x400, scoped, tag = 'output window, operand 1, single buffered']
    #allocation5 [shape = 's32[1]{0}', space=sflag, size = 0x4, scoped, tag = 'scoped memory for tpu_custom_call.1']
    %14 = vsyncpa [#allocation3], 0
    %15 = vsyncpa [#allocation5], 0
    // Predicated region
    $region2: #{tpu_custom_call.1} parent=1 // pred_check
      _
    $region3: #{tpu_custom_call.1} parent=1 // pred_check_branch
      %17 = sbr.rel (0) target = $region5
    $region4: #{tpu_custom_call.1} parent=1 // pred_region
      _
    $region5: #{tpu_custom_call.1} parent=1 // pred_fallthru
      _
    // Predicated region
    $region6: #{tpu_custom_call.1} parent=1 // pred_check
      _
    $region7: #{tpu_custom_call.1} parent=1 // pred_check_branch
      %19 = sbr.rel (0) target = $region9
    $region8: #{tpu_custom_call.1} parent=1 // pred_region
      _
    $region9: #{tpu_custom_call.1} parent=1 // pred_fallthru
      _
    // Predicated region
    $region10: #{tpu_custom_call.1} parent=1 // pred_check
      _
    $region11: #{tpu_custom_call.1} parent=1 // pred_check_branch
      %21 = sbr.rel (0) target = $region13
    $region12: #{tpu_custom_call.1} parent=1 // pred_region
      _
    $region13: #{tpu_custom_call.1} parent=1 // pred_fallthru
      _
    // Predicated region
    $region14: #{tpu_custom_call.1} parent=1 // pred_check
      _
    $region15: #{tpu_custom_call.1} parent=1 // pred_check_branch
      %23 = sbr.rel (0) target = $region17
    $region16: #{tpu_custom_call.1} parent=1 // pred_region
      _
    $region17: #{tpu_custom_call.1} parent=1 // pred_fallthru
      _
    // Predicated region
    $region18: #{tpu_custom_call.1} parent=1 // pred_check
      _
    $region19: #{tpu_custom_call.1} parent=1 // pred_check_branch
      %25 = sbr.rel (0) target = $region21
    $region20: #{tpu_custom_call.1} parent=1 // pred_region
      _
    $region21: #{tpu_custom_call.1} parent=1 // pred_fallthru
      _
    // Predicated region
    $region22: #{tpu_custom_call.1} parent=1 // pred_check
      _
    $region23: #{tpu_custom_call.1} parent=1 // pred_check_branch
      %27 = sbr.rel (0) target = $region25
    $region24: #{tpu_custom_call.1} parent=1 // pred_region
      _
    $region25: #{tpu_custom_call.1} parent=1 // pred_fallthru
      _
    // Predicated region
    $region26: #{tpu_custom_call.1} parent=1 // pred_check
      _
    $region27: #{tpu_custom_call.1} parent=1 // pred_check_branch
      %29 = sbr.rel (0) target = $region29
    $region28: #{tpu_custom_call.1} parent=1 // pred_region
      _
    $region29: #{tpu_custom_call.1} parent=1 // pred_fallthru
      _
    %v30 = vld [vmem:[%s0] sm:$0xff]
    %v31 = vld [vmem:[%s0 + $0x8] sm:$0xff]
    %v32 = vld [vmem:[%s0 + $0x10] sm:$0xff]
    %v33 = vld [vmem:[%s0 + $0x18] sm:$0xff]
    %v34 = vld [vmem:[%s0 + $0x20] sm:$0xff]
    %v35 = vld [vmem:[%s0 + $0x28] sm:$0xff]
    %v36 = vld [vmem:[%s0 + $0x30] sm:$0xff]
    %v37 = vld [vmem:[%s0 + $0x38] sm:$0xff]
    %v38 = vld [vmem:[%s0 + $0x40] sm:$0xff]
    %v39 = vld [vmem:[%s0 + $0x48] sm:$0xff]
    %v40 = vld [vmem:[%s0 + $0x50] sm:$0xff]
    %v41 = vld [vmem:[%s0 + $0x58] sm:$0xff]
    %v42 = vld [vmem:[%s0 + $0x60] sm:$0xff]
    %v43 = vld [vmem:[%s0 + $0x68] sm:$0xff]
    %v44 = vld [vmem:[%s0 + $0x70] sm:$0xff]
    %v45 = vld [vmem:[%s0 + $0x78] sm:$0xff]
    %v46 = vld [vmem:[%s1] sm:$0xff]
    %v47 = vld [vmem:[%s1 + $0x8] sm:$0xff]
    %v48 = vld [vmem:[%s1 + $0x10] sm:$0xff]
    %v49 = vld [vmem:[%s1 + $0x18] sm:$0xff]
    %v50 = vld [vmem:[%s1 + $0x20] sm:$0xff]
    %v51 = vld [vmem:[%s1 + $0x28] sm:$0xff]
    %v52 = vld [vmem:[%s1 + $0x30] sm:$0xff]
    %v53 = vld [vmem:[%s1 + $0x38] sm:$0xff]
    %v54 = vld [vmem:[%s2] sm:$0xff]
    %v55 = vld [vmem:[%s2 + $0x8] sm:$0xff]
    %v56 = vld [vmem:[%s2 + $0x10] sm:$0xff]
    %v57 = vld [vmem:[%s2 + $0x18] sm:$0xff]
    %v58 = vld [vmem:[%s2 + $0x20] sm:$0xff]
    %v59 = vld [vmem:[%s2 + $0x28] sm:$0xff]
    %v60 = vld [vmem:[%s2 + $0x30] sm:$0xff]
    %v61 = vld [vmem:[%s2 + $0x38] sm:$0xff]
    %63 = vset.pattern.permute.xlu0 0
    %64 = vperm.xlu0 %63, %v54
    %v65 = vpop.permute.xlu0 %64
    %68 = vset.pattern.permute.xlu0 0
    %69 = vperm.xlu0 %68, %v55
    %v70 = vpop.permute.xlu0 %69
    %73 = vset.pattern.permute.xlu0 0
    %74 = vperm.xlu0 %73, %v56
    %v75 = vpop.permute.xlu0 %74
    %78 = vset.pattern.permute.xlu0 0
    %79 = vperm.xlu0 %78, %v57
    %v80 = vpop.permute.xlu0 %79
    %83 = vset.pattern.permute.xlu0 0
    %84 = vperm.xlu0 %83, %v58
    %v85 = vpop.permute.xlu0 %84
    %88 = vset.pattern.permute.xlu0 0
    %89 = vperm.xlu0 %88, %v59
    %v90 = vpop.permute.xlu0 %89
    %93 = vset.pattern.permute.xlu0 0
    %94 = vperm.xlu0 %93, %v60
    %v95 = vpop.permute.xlu0 %94
    %98 = vset.pattern.permute.xlu0 0
    %99 = vperm.xlu0 %98, %v61
    %v100 = vpop.permute.xlu0 %99
    %vm102 = vcmask 31744
    %v104 = vsel %vm102, %v46, 0
    %v107 = vsel %vm102, %v47, 0
    %v110 = vsel %vm102, %v48, 0
    %v113 = vsel %vm102, %v49, 0
    %v116 = vsel %vm102, %v50, 0
    %v119 = vsel %vm102, %v51, 0
    %v122 = vsel %vm102, %v52, 0
    %v125 = vsel %vm102, %v53, 0
    %v128 = vsel %vm102, %v30, 0
    %v131 = vsel %vm102, %v31, 0
    %v134 = vsel %vm102, %v32, 0
    %v137 = vsel %vm102, %v33, 0
    %v140 = vsel %vm102, %v34, 0
    %v143 = vsel %vm102, %v35, 0
    %v146 = vsel %vm102, %v36, 0
    %v149 = vsel %vm102, %v37, 0
    %v152 = vsel %vm102, %v38, 0
    %v155 = vsel %vm102, %v39, 0
    %v158 = vsel %vm102, %v40, 0
    %v161 = vsel %vm102, %v41, 0
    %v164 = vsel %vm102, %v42, 0
    %v167 = vsel %vm102, %v43, 0
    %v170 = vsel %vm102, %v44, 0
    %v173 = vsel %vm102, %v45, 0
    %175 = vmatpush.xpose.msra.mxu0 %v173
    %176 = vmatpush.xpose.msra.mxu0 %v170
    %177 = vmatpush.xpose.msra.mxu0 %v167
    %178 = vmatpush.xpose.msra.mxu0 %v164
    %179 = vmatpush.xpose.msra.mxu0 %v161
    %180 = vmatpush.xpose.msra.mxu0 %v158
    %181 = vmatpush.xpose.msra.mxu0 %v155
    %182 = vmatpush.xpose.msra.mxu0 %v152
    %183 = vmatpush.xpose.msra.mxu0 %v149
    %184 = vmatpush.xpose.msra.mxu0 %v146
    %185 = vmatpush.xpose.msra.mxu0 %v143
    %186 = vmatpush.xpose.msra.mxu0 %v140
    %187 = vmatpush.xpose.msra.mxu0 %v137
    %188 = vmatpush.xpose.msra.mxu0 %v134
    %189 = vmatpush.xpose.msra.mxu0 %v131
    %190 = vmatpush.xpose.msra.mxu0 %v128
    %191 = vmatmul.f32.gmra.mxu0 %v104
    %v192 = vpop.f32.mrf.mxu0
    %v193 = vadd.f32 %v65, %v192
    %194 = vmatmul.f32.gmra.mxu0 %v107
    %v195 = vpop.f32.mrf.mxu0
    %v196 = vadd.f32 %v70, %v195
    %197 = vmatmul.f32.gmra.mxu0 %v110
    %v198 = vpop.f32.mrf.mxu0
    %v199 = vadd.f32 %v75, %v198
    %200 = vmatmul.f32.gmra.mxu0 %v113
    %v201 = vpop.f32.mrf.mxu0
    %v202 = vadd.f32 %v80, %v201
    %203 = vmatmul.f32.gmra.mxu0 %v116
    %v204 = vpop.f32.mrf.mxu0
    %v205 = vadd.f32 %v85, %v204
    %206 = vmatmul.f32.gmra.mxu0 %v119
    %v207 = vpop.f32.mrf.mxu0
    %v208 = vadd.f32 %v90, %v207
    %209 = vmatmul.f32.gmra.mxu0 %v122
    %v210 = vpop.f32.mrf.mxu0
    %v211 = vadd.f32 %v95, %v210
    %212 = vmatmul.f32.gmra.mxu0 %v125
    %v213 = vpop.f32.mrf.mxu0
    %v214 = vadd.f32 %v100, %v213
    %215 = vdwg.mxu0
    %v216 = vmax.f32 %v193, 0.0
    %v217 = vmax.f32 %v196, 0.0
    %v218 = vmax.f32 %v199, 0.0
    %v219 = vmax.f32 %v202, 0.0
    %v220 = vmax.f32 %v205, 0.0
    %v221 = vmax.f32 %v208, 0.0
    %v222 = vmax.f32 %v211, 0.0
    %v223 = vmax.f32 %v214, 0.0
    %v224 = vld [vmem:[%s3] sm:$0xff]
    %v225 = vld [vmem:[%s3 + $0x8] sm:$0xff]
    %v226 = vld [vmem:[%s3 + $0x10] sm:$0xff]
    %v227 = vld [vmem:[%s3 + $0x18] sm:$0xff]
    %v228 = vld [vmem:[%s3 + $0x20] sm:$0xff]
    %v229 = vld [vmem:[%s3 + $0x28] sm:$0xff]
    %v230 = vld [vmem:[%s3 + $0x30] sm:$0xff]
    %v231 = vld [vmem:[%s3 + $0x38] sm:$0xff]
    %v232 = vld [vmem:[%s4] sm:$0xff]
    %v233 = vld [vmem:[%s4 + $0x8] sm:$0xff]
    %v234 = vld [vmem:[%s4 + $0x10] sm:$0xff]
    %v235 = vld [vmem:[%s4 + $0x18] sm:$0xff]
    %v236 = vld [vmem:[%s4 + $0x20] sm:$0xff]
    %v237 = vld [vmem:[%s4 + $0x28] sm:$0xff]
    %v238 = vld [vmem:[%s4 + $0x30] sm:$0xff]
    %v239 = vld [vmem:[%s4 + $0x38] sm:$0xff]
    %241 = vset.pattern.permute.xlu0 0
    %242 = vperm.xlu0 %241, %v232
    %v243 = vpop.permute.xlu0 %242
    %246 = vset.pattern.permute.xlu0 0
    %247 = vperm.xlu0 %246, %v233
    %v248 = vpop.permute.xlu0 %247
    %251 = vset.pattern.permute.xlu0 0
    %252 = vperm.xlu0 %251, %v234
    %v253 = vpop.permute.xlu0 %252
    %256 = vset.pattern.permute.xlu0 0
    %257 = vperm.xlu0 %256, %v235
    %v258 = vpop.permute.xlu0 %257
    %261 = vset.pattern.permute.xlu0 0
    %262 = vperm.xlu0 %261, %v236
    %v263 = vpop.permute.xlu0 %262
    %266 = vset.pattern.permute.xlu0 0
    %267 = vperm.xlu0 %266, %v237
    %v268 = vpop.permute.xlu0 %267
    %271 = vset.pattern.permute.xlu0 0
    %272 = vperm.xlu0 %271, %v238
    %v273 = vpop.permute.xlu0 %272
    %276 = vset.pattern.permute.xlu0 0
    %277 = vperm.xlu0 %276, %v239
    %v278 = vpop.permute.xlu0 %277
    %vm280 = vcmask 523264
    %v282 = vsel %vm280, %v224, 0
    %v285 = vsel %vm280, %v225, 0
    %v288 = vsel %vm280, %v226, 0
    %v291 = vsel %vm280, %v227, 0
    %v294 = vsel %vm280, %v228, 0
    %v297 = vsel %vm280, %v229, 0
    %v300 = vsel %vm280, %v230, 0
    %v303 = vsel %vm280, %v231, 0
    %305 = vmatpush.msra.mxu0 0.0
    %306 = vmatpush.msra.mxu0 0.0
    %307 = vmatpush.msra.mxu0 0.0
    %308 = vmatpush.msra.mxu0 0.0
    %309 = vmatpush.msra.mxu0 0.0
    %310 = vmatpush.msra.mxu0 0.0
    %311 = vmatpush.msra.mxu0 0.0
    %312 = vmatpush.msra.mxu0 0.0
    %313 = vmatpush.msra.mxu0 %v223
    %314 = vmatpush.msra.mxu0 %v222
    %315 = vmatpush.msra.mxu0 %v221
    %316 = vmatpush.msra.mxu0 %v220
    %317 = vmatpush.msra.mxu0 %v219
    %318 = vmatpush.msra.mxu0 %v218
    %319 = vmatpush.msra.mxu0 %v217
    %320 = vmatpush.msra.mxu0 %v216
    %321 = vmatmul.f32.gmra.mxu0 %v282
    %v322 = vpop.f32.mrf.mxu0
    %v323 = vadd.f32 %v243, %v322
    %324 = vmatmul.f32.gmra.mxu0 %v285
    %v325 = vpop.f32.mrf.mxu0
    %v326 = vadd.f32 %v248, %v325
    %327 = vmatmul.f32.gmra.mxu0 %v288
    %v328 = vpop.f32.mrf.mxu0
    %v329 = vadd.f32 %v253, %v328
    %330 = vmatmul.f32.gmra.mxu0 %v291
    %v331 = vpop.f32.mrf.mxu0
    %v332 = vadd.f32 %v258, %v331
    %333 = vmatmul.f32.gmra.mxu0 %v294
    %v334 = vpop.f32.mrf.mxu0
    %v335 = vadd.f32 %v263, %v334
    %336 = vmatmul.f32.gmra.mxu0 %v297
    %v337 = vpop.f32.mrf.mxu0
    %v338 = vadd.f32 %v268, %v337
    %339 = vmatmul.f32.gmra.mxu0 %v300
    %v340 = vpop.f32.mrf.mxu0
    %v341 = vadd.f32 %v273, %v340
    %342 = vmatmul.f32.gmra.mxu0 %v303
    %v343 = vpop.f32.mrf.mxu0
    %v344 = vadd.f32 %v278, %v343
    %345 = vdwg.mxu0
    %v346 = vmax.f32 %v323, 0.0
    %v347 = vmax.f32 %v326, 0.0
    %v348 = vmax.f32 %v329, 0.0
    %v349 = vmax.f32 %v332, 0.0
    %v350 = vmax.f32 %v335, 0.0
    %v351 = vmax.f32 %v338, 0.0
    %v352 = vmax.f32 %v341, 0.0
    %v353 = vmax.f32 %v344, 0.0
    %v354 = vld [vmem:[%s5] sm:$0x3]
    %v355 = vld [vmem:[%s6] sm:$0x3]
    %357 = vset.pattern.permute.xlu0 0
    %358 = vperm.xlu0 %357, %v355
    %v359 = vpop.permute.xlu0 %358
    %v362 = vsel %vm280, %v354, 0
    %364 = vmatpush.msra.mxu0 0.0
    %365 = vmatpush.msra.mxu0 0.0
    %366 = vmatpush.msra.mxu0 0.0
    %367 = vmatpush.msra.mxu0 0.0
    %368 = vmatpush.msra.mxu0 0.0
    %369 = vmatpush.msra.mxu0 0.0
    %370 = vmatpush.msra.mxu0 0.0
    %371 = vmatpush.msra.mxu0 0.0
    %372 = vmatpush.msra.mxu0 %v353
    %373 = vmatpush.msra.mxu0 %v352
    %374 = vmatpush.msra.mxu0 %v351
    %375 = vmatpush.msra.mxu0 %v350
    %376 = vmatpush.msra.mxu0 %v349
    %377 = vmatpush.msra.mxu0 %v348
    %378 = vmatpush.msra.mxu0 %v347
    %379 = vmatpush.msra.mxu0 %v346
    %380 = vmatmul.f32.gmra.mxu0 %v362
    %v381 = vpop.f32.mrf.mxu0
    %v382 = vadd.f32 %v359, %v381
    %383 = vdwg.mxu0
    %384 = vst [vmem:[#allocation2] sm:$0x3] %v382
    %v386 = vrot.slane %v382, 7
    %vm388 = vcmp.gt.f32.partialorder %v382, %v386
    %v389 = vsel %vm388, 1, 0
    %390 = vst [vmem:[#allocation4 - $0x1] sm:$0x2] %v389
    // Predicated region
    $region30: #{tpu_custom_call.1} parent=1 // pred_check
      _
    $region31: #{tpu_custom_call.1} parent=1 // pred_check_branch
      %392 = sbr.rel (0) target = $region33
    $region32: #{tpu_custom_call.1} parent=1 // pred_region
      %394 = vsyncadd [#allocation3], 0
      %s396 = sshll.u32 [#allocation2], 4
      %s397 = int_to_ptr.vmem [resolvable:$true] %s396
      %s398 = sshll.u32 %s7, 4
      %s399 = int_to_ptr.hbm [resolvable:$true] %s398
      %401 = dma.vmem_to_hbm [thread:$0]  %s397, 32, %s399, [#allocation3]
    $region33: #{tpu_custom_call.1} parent=1 // pred_fallthru
      _
    // Predicated region
    $region34: #{tpu_custom_call.1} parent=1 // pred_check
      _
    $region35: #{tpu_custom_call.1} parent=1 // pred_check_branch
      %403 = sbr.rel (0) target = $region37
    $region36: #{tpu_custom_call.1} parent=1 // pred_region
      %405 = vsyncadd [#allocation5], 0
      %s407 = sshll.u32 [#allocation4], 4
      %s408 = int_to_ptr.vmem [resolvable:$true] %s407
      %s409 = sshll.u32 %s8, 4
      %s410 = int_to_ptr.hbm [resolvable:$true] %s409
      %412 = dma.vmem_to_hbm [thread:$0]  %s408, 16, %s410, [#allocation5]
    $region37: #{tpu_custom_call.1} parent=1 // pred_fallthru
      _
    // Predicated region
    $region38: #{tpu_custom_call.1} parent=1 // pred_check
      _
    $region39: #{tpu_custom_call.1} parent=1 // pred_check_branch
      %414 = sbr.rel (0) target = $region41
    $region40: #{tpu_custom_call.1} parent=1 // pred_region
      %416 = dma.done [#allocation3], 32
    $region41: #{tpu_custom_call.1} parent=1 // pred_fallthru
      _
    // Predicated region
    $region42: #{tpu_custom_call.1} parent=1 // pred_check
      _
    $region43: #{tpu_custom_call.1} parent=1 // pred_check_branch
      %418 = sbr.rel (0) target = $region45
    $region44: #{tpu_custom_call.1} parent=1 // pred_region
      %420 = dma.done [#allocation5], 16
    $region45: #{tpu_custom_call.1} parent=1 // pred_fallthru
      _
    %421 = vsyncpa [#allocation3], 1
    %422 = vsyncpa [#allocation5], 1

</llo_original>
